<compile_context>
chip_gen: v6e
topology: v6e:2x2x1
jax: 0.10.0
libtpu: 0.0.40
codegen_flags: <defaults>
</compile_context>

<pallas_src>
import numpy as np
import jax
import jax.numpy as jnp
from jax.experimental import pallas as pl
from jax.experimental.pallas import tpu as pltpu

FEATURE_SIZE = 32


def _round_up(x, m):
    return ((x + m - 1) // m) * m


def _choose_tile_c(C, max_tile=512):
    """Row-tile size: multiple of 8, >=2 tiles when possible (v7x megacore),
    and minimal padding (c_pad - C < tile_c)."""
    n_tiles = max(2, pl.cdiv(C, max_tile))
    tile = _round_up(max(pl.cdiv(C, n_tiles), 8), 8)
    return tile


def _pick_vmem_limit():
    """~75% of physical VMEM, capped at 96 MiB (v5e/v6e: 128 MiB physical ->
    96 MiB; v7x: 64 MiB physical -> 48 MiB)."""
    cap = 64 * 1024 * 1024
    try:
        cap = int(pltpu.get_tpu_info().vmem_capacity_bytes)
    except Exception:
        pass
    return min((cap * 3) // 4, 96 * 1024 * 1024)


# ----------------------------- Pallas kernel --------------------------------
def _gru_cell2_kernel(adj_ref, pg_ref, ch_ref, wh_ref, b_ref, out_ref):
    """One channel-row tile:
        gates = adj @ path_gates + h @ Wh + b     (lane-dense, 4F = 128 cols)
        columns [0:F)=r, [F:2F)=z, [2F:3F)=i_n (x-only), [3F:4F)=h_n (h-only)
        h' = (1 - z) * n + z * h
    """
    f32 = jnp.float32
    F = ch_ref.shape[-1]
    h = ch_ref[...]                                                   # (tc, F) f32

    # Dominant matmul: bf16 adjacency tile x bf16 per-path gate contributions,
    # f32 accumulation, N = 4F = 128 lanes (full MXU column utilization).
    gates = jnp.dot(adj_ref[...], pg_ref[...], preferred_element_type=f32)
    # Small hidden-state contribution (K = F = 32), kept in f32 for parity.
    gates = gates + jnp.dot(h, wh_ref[...], preferred_element_type=f32)
    gates = gates + b_ref[...]                                        # (tc, 4F)

    rz = jax.nn.sigmoid(gates[:, :2 * F])                             # one EUP pass
    r = rz[:, :F]
    z = rz[:, F:]
    n = jnp.tanh(gates[:, 2 * F:3 * F] + r * gates[:, 3 * F:])
    out_ref[...] = ((1.0 - z) * n + z * h).astype(out_ref.dtype)


# ------------------------------- wrapper -------------------------------------
def gru_cell2_forward(path_features, channel_features, adj, wx, wh, b_all,
                      *, max_tile_c=512):
    """channel_features' = GRUCell(adj @ path_features, channel_features)."""
    C, F = channel_features.shape
    P = path_features.shape[0]
    assert adj.shape == (C, P)
    assert wx.shape == (F, 4 * F) and wh.shape == (F, 4 * F)
    assert b_all.shape == (1, 4 * F)

    # Per-path gate contributions, computed once in f32 then cast to bf16 so
    # the dominant in-kernel matmul is a native bf16 MXU op with 128 lanes.
    path_gates = (path_features.astype(jnp.float32) @ wx).astype(jnp.bfloat16)
    adj_bf16 = adj.astype(jnp.bfloat16)   # 0/1/small-integer entries: exact

    tile_c = _choose_tile_c(C, max_tile_c)
    c_pad = _round_up(C, tile_c)
    ch = channel_features
    if c_pad != C:
        adj_bf16 = jnp.pad(adj_bf16, ((0, c_pad - C), (0, 0)))
        ch = jnp.pad(ch, ((0, c_pad - C), (0, 0)))

    grid = (c_pad // tile_c,)
    out = pl.pallas_call(
        _gru_cell2_kernel,
        out_shape=jax.ShapeDtypeStruct((c_pad, F), jnp.float32),
        grid_spec=pltpu.PrefetchScalarGridSpec(
            num_scalar_prefetch=0,
            grid=grid,
            in_specs=[
                pl.BlockSpec((tile_c, P), lambda i: (i, 0)),       # adjacency tile (bf16)
                pl.BlockSpec((P, 4 * F), lambda i: (0, 0)),        # path_gates (resident, bf16)
                pl.BlockSpec((tile_c, F), lambda i: (i, 0)),       # channel hidden tile (f32)
                pl.BlockSpec((F, 4 * F), lambda i: (0, 0)),        # packed hidden weights (f32)
                pl.BlockSpec((1, 4 * F), lambda i: (0, 0)),        # packed bias (f32)
            ],
            out_specs=pl.BlockSpec((tile_c, F), lambda i: (i, 0)),
        ),
        compiler_params=pltpu.CompilerParams(
            dimension_semantics=("parallel",),   # shards row tiles across v7x's 2 TCs
            vmem_limit_bytes=_pick_vmem_limit(),
        ),
    )(adj_bf16, path_gates, ch, wh, b_all)
    return out[:C]


# ------------------------- host-side parameter glue --------------------------
def pack_gru_params(w_ih, w_hh, b_ih, b_hh):
    """Pack PyTorch-layout nn.GRU weights ((3F, F), gate order r,z,n) into two
    (F, 4F) matrices Wx / Wh (lane-dense N = 4F = 128).  i_n / h_n stay in
    separate column blocks (h_n is gated by r, so they must NOT be summed)."""
    three_f, F = w_ih.shape
    assert three_f == 3 * F
    W_ir, W_iz, W_in = w_ih[:F].T, w_ih[F:2 * F].T, w_ih[2 * F:].T   # (F, F) each
    W_hr, W_hz, W_hn = w_hh[:F].T, w_hh[F:2 * F].T, w_hh[2 * F:].T
    zeros = jnp.zeros((F, F), jnp.float32)
    wx = jnp.concatenate([W_ir, W_iz, W_in, zeros], axis=1).astype(jnp.float32)  # (F, 4F)
    wh = jnp.concatenate([W_hr, W_hz, zeros, W_hn], axis=1).astype(jnp.float32)  # (F, 4F)
    b_all = jnp.concatenate([
        b_ih[:F] + b_hh[:F],              # r bias
        b_ih[F:2 * F] + b_hh[F:2 * F],    # z bias
        b_ih[2 * F:],                     # i_n bias
        b_hh[2 * F:],                     # h_n bias
    ]).reshape(1, 4 * F).astype(jnp.float32)
    return wx, wh, b_all


def build_adjacency(channels_meta, num_paths):
    """Dense (C, P) path->channel incidence matrix, built with numpy on host
    (avoids O(edges) XLA scatter ops).  Entries carry multiplicity so repeated
    path indices are summed exactly like the reference loop."""
    C = len(channels_meta)
    adj = np.zeros((C, num_paths), np.float32)
    for c, meta in enumerate(channels_meta):
        for p in meta["path_idx"]:
            adj[c, p] += 1.0
    # Multiplicities must stay exactly representable in bf16 (integers <= 256).
    assert adj.max(initial=0.0) <= 256.0, "adjacency multiplicity too large for bf16"
    return jnp.asarray(adj)


# ------------------------------- reference -----------------------------------
def gru_cell2_reference(path_features, channel_features, adj, w_ih, w_hh, b_ih, b_hh):
    """Pure-JAX f32 reference with PyTorch GRU gate math."""
    F = channel_features.shape[1]
    x = adj @ path_features
    h = channel_features
    gi = x @ w_ih.T + b_ih
    gh = h @ w_hh.T + b_hh
    r = jax.nn.sigmoid(gi[:, :F] + gh[:, :F])
    z = jax.nn.sigmoid(gi[:, F:2 * F] + gh[:, F:2 * F])
    n = jnp.tanh(gi[:, 2 * F:] + r * gh[:, 2 * F:])
    return (1.0 - z) * n + z * h


# --------------------------------- main ---------------------------------------
if __name__ == "__main__":
    key = jax.random.PRNGKey(0)
    F = FEATURE_SIZE
    C, P = 16, 8          # 16 channels, 8 paths, feature_size = 32

    # Deterministic channel -> path membership (what channels[c]['path_idx']
    # holds in the PyTorch module).
    channels_meta = [{"path_idx": [p for p in range(P) if (p + c) % 3 == 0]}
                     for c in range(C)]

    k_pa, k_ch, k_wih, k_whh, k_bih, k_bhh = jax.random.split(key, 6)
    path_features = jax.random.normal(k_pa, (P, F), jnp.float32)
    channel_features = jax.random.normal(k_ch, (C, F), jnp.float32)

    bound = 1.0 / np.sqrt(F)   # PyTorch nn.GRU default init
    w_ih = jax.random.uniform(k_wih, (3 * F, F), jnp.float32, -bound, bound)
    w_hh = jax.random.uniform(k_whh, (3 * F, F), jnp.float32, -bound, bound)
    b_ih = jax.random.uniform(k_bih, (3 * F,), jnp.float32, -bound, bound)
    b_hh = jax.random.uniform(k_bhh, (3 * F,), jnp.float32, -bound, bound)

    adj = build_adjacency(channels_meta, P)
    wx, wh, b_all = pack_gru_params(w_ih, w_hh, b_ih, b_hh)

    out = gru_cell2_forward(path_features, channel_features, adj, wx, wh, b_all)
    out = jax.block_until_ready(out)

    ref = gru_cell2_reference(path_features, channel_features, adj,
                              w_ih, w_hh, b_ih, b_hh)
    max_err = float(jnp.max(jnp.abs(out - ref)))

    assert out.shape == (C, F)
    assert bool(jnp.all(jnp.isfinite(out)))
    # bf16 adjacency / path_gates operands (f32 accumulation) give ~1e-3..1e-2
    # abs error vs the full-f32 reference.
    assert max_err < 5e-2, f"max abs err vs f32 reference: {max_err}"
    print("KERNEL_OK")
</pallas_src>

<mosaic_0001>
module attributes {stable_mosaic.version = 11 : i64} {
  func.func @_gru_cell2_kernel(%arg0: i32, %arg1: memref<8x8xbf16, #tpu.memory_space<vmem>>, %arg2: memref<8x128xbf16, #tpu.memory_space<vmem>>, %arg3: memref<8x32xf32, #tpu.memory_space<vmem>>, %arg4: memref<32x128xf32, #tpu.memory_space<vmem>>, %arg5: memref<1x128xf32, #tpu.memory_space<vmem>>, %arg6: memref<8x32xf32, #tpu.memory_space<vmem>>) attributes {dimension_semantics = [#tpu.dimension_semantics<parallel>], iteration_bounds = array<i64: 2>, scalar_prefetch = 0 : i64, scratch_operands = 0 : i64, tpu.core_type = #tpu.core_type<tc>, window_params = [{transform_indices = @transform_0, window_bounds = array<i64: 8, 8>}, {pipeline_mode = #tpu.pipeline_mode<synchronous>, transform_indices = @transform_1, window_bounds = array<i64: 8, 128>}, {transform_indices = @transform_2, window_bounds = array<i64: 8, 32>}, {pipeline_mode = #tpu.pipeline_mode<synchronous>, transform_indices = @transform_3, window_bounds = array<i64: 32, 128>}, {pipeline_mode = #tpu.pipeline_mode<synchronous>, transform_indices = @transform_4, window_bounds = array<i64: 1, 128>}, {transform_indices = @transform_5, window_bounds = array<i64: 8, 32>}]} {
    %c0 = arith.constant 0 : index
    %c0_0 = arith.constant 0 : index
    %0 = vector.load %arg3[%c0, %c0_0] : memref<8x32xf32, #tpu.memory_space<vmem>>, vector<8x32xf32>
    %c0_1 = arith.constant 0 : index
    %c0_2 = arith.constant 0 : index
    %1 = vector.load %arg1[%c0_1, %c0_2] : memref<8x8xbf16, #tpu.memory_space<vmem>>, vector<8x8xbf16>
    %c0_3 = arith.constant 0 : index
    %c0_4 = arith.constant 0 : index
    %2 = vector.load %arg2[%c0_3, %c0_4] : memref<8x128xbf16, #tpu.memory_space<vmem>>, vector<8x128xbf16>
    %cst = arith.constant dense<0.000000e+00> : vector<8x128xf32>
    %3 = tpu.matmul %1, %2, %cst {dimension_numbers = #tpu.dot_dimension_numbers<[1], [0], [0], [1], [0, 0, 1, 1], [], []>} : vector<8x8xbf16>, vector<8x128xbf16>, vector<8x128xf32> -> vector<8x128xf32>
    %c0_5 = arith.constant 0 : index
    %c0_6 = arith.constant 0 : index
    %4 = vector.load %arg4[%c0_5, %c0_6] : memref<32x128xf32, #tpu.memory_space<vmem>>, vector<32x128xf32>
    %cst_7 = arith.constant dense<0.000000e+00> : vector<8x128xf32>
    %5 = tpu.matmul %0, %4, %cst_7 {dimension_numbers = #tpu.dot_dimension_numbers<[1], [0], [0], [1], [0, 0, 1, 1], [], []>} : vector<8x32xf32>, vector<32x128xf32>, vector<8x128xf32> -> vector<8x128xf32>
    %6 = arith.addf %3, %5 : vector<8x128xf32>
    %c0_8 = arith.constant 0 : index
    %c0_9 = arith.constant 0 : index
    %7 = vector.load %arg5[%c0_8, %c0_9] : memref<1x128xf32, #tpu.memory_space<vmem>>, vector<1x128xf32>
    %8 = vector.broadcast %7 : vector<1x128xf32> to vector<8x128xf32>
    %9 = arith.addf %6, %8 : vector<8x128xf32>
    %10 = vector.extract_strided_slice %9 {offsets = [0, 0], sizes = [8, 64], strides = [1, 1]} : vector<8x128xf32> to vector<8x64xf32>
    %11 = arith.negf %10 : vector<8x64xf32>
    %12 = math.exp %11 : vector<8x64xf32>
    %cst_10 = arith.constant 1.000000e+00 : f32
    %13 = vector.broadcast %cst_10 : f32 to vector<8x64xf32>
    %14 = arith.addf %13, %12 : vector<8x64xf32>
    %15 = arith.divf %13, %14 : vector<8x64xf32>
    %16 = vector.extract_strided_slice %15 {offsets = [0, 0], sizes = [8, 32], strides = [1, 1]} : vector<8x64xf32> to vector<8x32xf32>
    %17 = vector.extract_strided_slice %15 {offsets = [0, 32], sizes = [8, 32], strides = [1, 1]} : vector<8x64xf32> to vector<8x32xf32>
    %18 = vector.extract_strided_slice %9 {offsets = [0, 64], sizes = [8, 32], strides = [1, 1]} : vector<8x128xf32> to vector<8x32xf32>
    %19 = vector.extract_strided_slice %9 {offsets = [0, 96], sizes = [8, 32], strides = [1, 1]} : vector<8x128xf32> to vector<8x32xf32>
    %20 = arith.mulf %16, %19 : vector<8x32xf32>
    %21 = arith.addf %18, %20 : vector<8x32xf32>
    %22 = math.tanh %21 : vector<8x32xf32>
    %cst_11 = arith.constant 1.000000e+00 : f32
    %23 = vector.broadcast %cst_11 : f32 to vector<8x32xf32>
    %24 = arith.subf %23, %17 : vector<8x32xf32>
    %25 = arith.mulf %24, %22 : vector<8x32xf32>
    %26 = arith.mulf %17, %0 : vector<8x32xf32>
    %27 = arith.addf %25, %26 : vector<8x32xf32>
    %c0_12 = arith.constant 0 : index
    %c0_13 = arith.constant 0 : index
    %28 = vector.load %arg6[%c0_12, %c0_13] : memref<8x32xf32, #tpu.memory_space<vmem>>, vector<8x32xf32>
    tpu.vector_store %arg6[%c0_12, %c0_13], %27 {strides = array<i32>} : memref<8x32xf32, #tpu.memory_space<vmem>>, vector<8x32xf32>,
    return
  }
  func.func @transform_0(%arg0: i32) -> (i32, i32) {
    %c0_i32 = arith.constant 0 : i32
    %c0_i32_0 = arith.constant 0 : i32
    return %arg0, %c0_i32 : i32, i32
  }
  func.func @transform_1(%arg0: i32) -> (i32, i32) {
    %c0_i32 = arith.constant 0 : i32
    %c0_i32_0 = arith.constant 0 : i32
    %c0_i32_1 = arith.constant 0 : i32
    return %c0_i32, %c0_i32_0 : i32, i32
  }
  func.func @transform_2(%arg0: i32) -> (i32, i32) {
    %c0_i32 = arith.constant 0 : i32
    %c0_i32_0 = arith.constant 0 : i32
    return %arg0, %c0_i32 : i32, i32
  }
  func.func @transform_3(%arg0: i32) -> (i32, i32) {
    %c0_i32 = arith.constant 0 : i32
    %c0_i32_0 = arith.constant 0 : i32
    %c0_i32_1 = arith.constant 0 : i32
    return %c0_i32, %c0_i32_0 : i32, i32
  }
  func.func @transform_4(%arg0: i32) -> (i32, i32) {
    %c0_i32 = arith.constant 0 : i32
    %c0_i32_0 = arith.constant 0 : i32
    %c0_i32_1 = arith.constant 0 : i32
    return %c0_i32, %c0_i32_0 : i32, i32
  }
  func.func @transform_5(%arg0: i32) -> (i32, i32) {
    %c0_i32 = arith.constant 0 : i32
    %c0_i32_0 = arith.constant 0 : i32
    return %arg0, %c0_i32 : i32, i32
  }
}

</mosaic_0001>

<llo_original>
// kernel: tpu_custom_call.1
$region0: #{tpu_custom_call.1}
  #allocation0 [shape = 'u32[]', space=smem, size = 0x4, offset = 0x4, fixed_abs, tag = 'smem constant byte address 0x4 - core index']
  #allocation1 [shape = 'u32[144,128]{1,0:T(1,128)}', space=vmem, size = 0x12000, scoped, tag = 'internal scratch']
  %s0 = inlined_call_operand.vmem [shape: bf16[16,8], index: 0, kind: input, shape index: {}]
  %s1 = inlined_call_operand.vmem [shape: bf16[8,128], index: 1, kind: input, shape index: {}]
  %s2 = inlined_call_operand.hbm [shape: f32[16,32], index: 2, kind: input, shape index: {}]
  %s3 = inlined_call_operand.hbm [shape: f32[32,128], index: 3, kind: input, shape index: {}]
  %s4 = inlined_call_operand.vmem [shape: f32[1,128], index: 4, kind: input, shape index: {}]
  %s5 = inlined_call_operand.hbm [shape: f32[16,32], index: 5, kind: output, shape index: {}]
  %s6 = sld [smem:[#allocation0]]
  $region61: #{tpu_custom_call.1} parent=0
    _
  %s8 = ssub.s32 1, %s6
  %s9 = scalar_select 0, %s8, %s6
  $region1: #{tpu_custom_call.1} parent=0
    #allocation2 [shape = 'u8[8192]{0}', space=vmem, size = 0x2000, scoped, tag = 'input window, operand 2']
    #allocation3 [shape = 's32[2]{0}', space=sflag, size = 0x8, scoped, tag = 'scoped memory for tpu_custom_call.1']
    #allocation4 [shape = 's32[2]{0}', space=sflag, size = 0x8, scoped, tag = 'scoped memory for tpu_custom_call.1']
    #allocation5 [shape = 'u8[16384]{0}', space=vmem, size = 0x4000, scoped, tag = 'input window, operand 3, single buffered']
    #allocation6 [shape = 's32[1]{0}', space=sflag, size = 0x4, scoped, tag = 'scoped memory for tpu_custom_call.1']
    #allocation7 [shape = 'u8[8192]{0}', space=vmem, size = 0x2000, scoped, tag = 'output window, operand 0']
    %10 = vsyncpa [#allocation3], 0
    %s11 = scalar_lea.sflag [#allocation3], 1
    %12 = vsyncpa %s11, 0
    %13 = vsyncpa [#allocation6], 0
    %14 = vsyncpa [#allocation4], 0
    %s15 = scalar_lea.sflag [#allocation4], 1
    %16 = vsyncpa %s15, 0
    loop: start=0, step=1, limit=4
    $region2: #{tpu_custom_call.1} parent=1 // loop_pre_header
      _
    $region3: #{tpu_custom_call.1} parent=1 // loop_header
      %s18 = sphi 0, %s22
      %p19 = scmp.ge.s32.totalorder %s18, 4
      %s28 = sphi 0, %s30
      %s31 = sphi 0, %s28
      %s32 = sphi 0, %s31
      %s48 = sphi 0, %s32
      %s52 = sphi 0, %s52
      %s54 = sphi 0, %s52
      %s55 = sphi 0, %s54
      %s69 = sphi 0, %s55
      %s75 = sphi 0, %s77
      %s78 = sphi 0, %s75
      %s79 = sphi 0, %s78
      %s95 = sphi 0, %s79
      %s99 = sphi 0, %s99
      %s101 = sphi 0, %s99
      %s102 = sphi 0, %s101
      %s116 = sphi 0, %s102
      %s120 = sphi 0, %s120
      %s122 = sphi 0, %s120
      %s123 = sphi 0, %s122
      %s137 = sphi 0, %s123
      %s143 = sphi 0, %s145
      %s146 = sphi 0, %s143
      %s147 = sphi 0, %s146
      %s163 = sphi 0, %s147
    $region4: #{tpu_custom_call.1} parent=1 // loop_header_branch
      %21 = sbr.rel (%p19) target = $region8
    $region5: #{tpu_custom_call.1} parent=1 // loop_body
      %s23 = ssub.s32 %s18, 1
      %s24 = ssub.s32 %s18, 2
      %s25 = sadd.s32 %s18, 1
      %s26 = ssub.s32 %s18, %s25
      %p27 = scmp.eq.s32.totalorder %s26, 0
      %s29 = sadd.s32 %s28, 1
      %s30 = scalar_select %p27, %s28, %s29
      %p33 = pneg %p27
      %p34 = scmp.eq.s32.totalorder %s18, 1
      %p35 = por %p33, %p34
      %p36 = scmp.ne.s32.totalorder %s28, %s31
      %p37 = scmp.eq.s32.totalorder %s18, 0
      %p38 = por %p36, %p37
      %p39 = scmp.ne.s32.totalorder %s28, %s31
      %p40 = scmp.eq.s32.totalorder %s23, 1
      %p41 = por %p39, %p40
      %p42 = scmp.ne.s32.totalorder %s31, %s32
      %p43 = scmp.eq.s32.totalorder %s23, 0
      %p44 = por %p42, %p43
      %p45 = scmp.ne.s32.totalorder %s31, %s32
      %p46 = scmp.eq.s32.totalorder %s24, 1
      %p47 = por %p45, %p46
      %p49 = scmp.ne.s32.totalorder %s32, %s48
      %p50 = scmp.eq.s32.totalorder %s24, 0
      %p51 = por %p49, %p50
      %s53 = sadd.s32 %s52, 1
      %p56 = scmp.eq.s32.totalorder %s18, 1
      %p57 = scmp.ne.s32.totalorder %s52, %s54
      %p58 = scmp.eq.s32.totalorder %s18, 0
      %p59 = por %p57, %p58
      %p60 = scmp.ne.s32.totalorder %s52, %s54
      %p61 = scmp.eq.s32.totalorder %s23, 1
      %p62 = por %p60, %p61
      %p63 = scmp.ne.s32.totalorder %s54, %s55
      %p64 = scmp.eq.s32.totalorder %s23, 0
      %p65 = por %p63, %p64
      %p66 = scmp.ne.s32.totalorder %s54, %s55
      %p67 = scmp.eq.s32.totalorder %s24, 1
      %p68 = por %p66, %p67
      %p70 = scmp.ne.s32.totalorder %s55, %s69
      %p71 = scmp.eq.s32.totalorder %s24, 0
      %p72 = por %p70, %p71
      %s73 = ssub.s32 %s18, %s25
      %p74 = scmp.eq.s32.totalorder %s73, 0
      %s76 = sadd.s32 %s75, 1
      %s77 = scalar_select %p74, %s75, %s76
      %p80 = pneg %p74
      %p81 = scmp.eq.s32.totalorder %s18, 1
      %p82 = por %p80, %p81
      %p83 = scmp.ne.s32.totalorder %s75, %s78
      %p84 = scmp.eq.s32.totalorder %s18, 0
      %p85 = por %p83, %p84
      %p86 = scmp.ne.s32.totalorder %s75, %s78
      %p87 = scmp.eq.s32.totalorder %s23, 1
      %p88 = por %p86, %p87
      %p89 = scmp.ne.s32.totalorder %s78, %s79
      %p90 = scmp.eq.s32.totalorder %s23, 0
      %p91 = por %p89, %p90
      %p92 = scmp.ne.s32.totalorder %s78, %s79
      %p93 = scmp.eq.s32.totalorder %s24, 1
      %p94 = por %p92, %p93
      %p96 = scmp.ne.s32.totalorder %s79, %s95
      %p97 = scmp.eq.s32.totalorder %s24, 0
      %p98 = por %p96, %p97
      %s100 = sadd.s32 %s99, 1
      %p103 = scmp.eq.s32.totalorder %s18, 1
      %p104 = scmp.ne.s32.totalorder %s99, %s101
      %p105 = scmp.eq.s32.totalorder %s18, 0
      %p106 = por %p104, %p105
      %p107 = scmp.ne.s32.totalorder %s99, %s101
      %p108 = scmp.eq.s32.totalorder %s23, 1
      %p109 = por %p107, %p108
      %p110 = scmp.ne.s32.totalorder %s101, %s102
      %p111 = scmp.eq.s32.totalorder %s23, 0
      %p112 = por %p110, %p111
      %p113 = scmp.ne.s32.totalorder %s101, %s102
      %p114 = scmp.eq.s32.totalorder %s24, 1
      %p115 = por %p113, %p114
      %p117 = scmp.ne.s32.totalorder %s102, %s116
      %p118 = scmp.eq.s32.totalorder %s24, 0
      %p119 = por %p117, %p118
      %s121 = sadd.s32 %s120, 1
      %p124 = scmp.eq.s32.totalorder %s18, 1
      %p125 = scmp.ne.s32.totalorder %s120, %s122
      %p126 = scmp.eq.s32.totalorder %s18, 0
      %p127 = por %p125, %p126
      %p128 = scmp.ne.s32.totalorder %s120, %s122
      %p129 = scmp.eq.s32.totalorder %s23, 1
      %p130 = por %p128, %p129
      %p131 = scmp.ne.s32.totalorder %s122, %s123
      %p132 = scmp.eq.s32.totalorder %s23, 0
      %p133 = por %p131, %p132
      %p134 = scmp.ne.s32.totalorder %s122, %s123
      %p135 = scmp.eq.s32.totalorder %s24, 1
      %p136 = por %p134, %p135
      %p138 = scmp.ne.s32.totalorder %s123, %s137
      %p139 = scmp.eq.s32.totalorder %s24, 0
      %p140 = por %p138, %p139
      %s141 = ssub.s32 %s18, %s25
      %p142 = scmp.eq.s32.totalorder %s141, 0
      %s144 = sadd.s32 %s143, 1
      %s145 = scalar_select %p142, %s143, %s144
      %p148 = pneg %p142
      %p149 = scmp.eq.s32.totalorder %s18, 1
      %p150 = por %p148, %p149
      %p151 = scmp.ne.s32.totalorder %s143, %s146
      %p152 = scmp.eq.s32.totalorder %s18, 0
      %p153 = por %p151, %p152
      %p154 = scmp.ne.s32.totalorder %s143, %s146
      %p155 = scmp.eq.s32.totalorder %s23, 1
      %p156 = por %p154, %p155
      %p157 = scmp.ne.s32.totalorder %s146, %s147
      %p158 = scmp.eq.s32.totalorder %s23, 0
      %p159 = por %p157, %p158
      %p160 = scmp.ne.s32.totalorder %s146, %s147
      %p161 = scmp.eq.s32.totalorder %s24, 1
      %p162 = por %p160, %p161
      %p164 = scmp.ne.s32.totalorder %s147, %s163
      %p165 = scmp.eq.s32.totalorder %s24, 0
      %p166 = por %p164, %p165
      %p167 = scmp.le.s32.totalorder 1, %s18
      %p168 = scmp.lt.s32.totalorder %s18, 3
      %p169 = pnand %p167, %p168
      %p170 = pneg %p169
      // Predicated region
      $region9: #{tpu_custom_call.1} parent=5 // pred_check
        _
      $region10: #{tpu_custom_call.1} parent=5 // pred_check_branch
        %172 = sbr.rel (%p169) target = $region12
      $region11: #{tpu_custom_call.1} parent=5 // pred_region
        %s173 = ssub.s32 %s18, 1
        // Predicated region
        $region13: #{tpu_custom_call.1} parent=11 // pred_check
          %p174 = pneg %p65
        $region14: #{tpu_custom_call.1} parent=11 // pred_check_branch
          %176 = sbr.rel (%p174) target = $region16
        $region15: #{tpu_custom_call.1} parent=11 // pred_region
          _
        $region16: #{tpu_custom_call.1} parent=11 // pred_fallthru
          _
        // Predicated region
        $region17: #{tpu_custom_call.1} parent=11 // pred_check
          %p177 = pneg %p112
        $region18: #{tpu_custom_call.1} parent=11 // pred_check_branch
          %179 = sbr.rel (%p177) target = $region20
        $region19: #{tpu_custom_call.1} parent=11 // pred_region
          %s181 = ssub.s32 512, 512
          %182 = vsyncadd [#allocation6], %s181
          %s183 = sshll.u32 [#allocation5], 4
          %s184 = int_to_ptr.vmem [resolvable:$true] %s183
          %189 = dma.hbm_to_vmem [thread:$0]  %s3, 512, %s184, [#allocation6], 128, 128, 8
        $region20: #{tpu_custom_call.1} parent=11 // pred_fallthru
          _
        // Predicated region
        $region21: #{tpu_custom_call.1} parent=11 // pred_check
          %p190 = pneg %p133
        $region22: #{tpu_custom_call.1} parent=11 // pred_check_branch
          %192 = sbr.rel (%p190) target = $region24
        $region23: #{tpu_custom_call.1} parent=11 // pred_region
          _
        $region24: #{tpu_custom_call.1} parent=11 // pred_fallthru
          _
      $region12: #{tpu_custom_call.1} parent=5 // pred_fallthru
        _
      %p193 = scmp.lt.s32.totalorder %s18, 2
      // Predicated region
      $region25: #{tpu_custom_call.1} parent=5 // pred_check
        %p194 = pneg %p193
      $region26: #{tpu_custom_call.1} parent=5 // pred_check_branch
        %196 = sbr.rel (%p194) target = $region28
      $region27: #{tpu_custom_call.1} parent=5 // pred_region
        // Predicated region
        $region29: #{tpu_custom_call.1} parent=27 // pred_check
          %p197 = pneg %p38
        $region30: #{tpu_custom_call.1} parent=27 // pred_check_branch
          %199 = sbr.rel (%p197) target = $region32
        $region31: #{tpu_custom_call.1} parent=27 // pred_region
          %p200 = scmp.lt.s32.totalorder %s18, 1
          %s201 = scalar_select %p200, %s18, 1
          %s202 = smul.addr %s201, 4
          %s203 = scalar_lea.vmem %s0, %s202
        $region32: #{tpu_custom_call.1} parent=27 // pred_fallthru
          _
        // Predicated region
        $region33: #{tpu_custom_call.1} parent=27 // pred_check
          %p204 = pneg %p85
        $region34: #{tpu_custom_call.1} parent=27 // pred_check_branch
          %206 = sbr.rel (%p204) target = $region36
        $region35: #{tpu_custom_call.1} parent=27 // pred_region
          %s207 = sand.u32 %s75, 1
          %s208 = scalar_lea.sflag [#allocation3], %s207
          %s209 = sand.u32 %s75, 1
          %s210 = smul.addr %s209, 8
          %s211 = scalar_lea.vmem [#allocation2], %s210
          %s213 = ssub.s32 128, 128
          %214 = vsyncadd %s208, %s213
          %s215 = smul.addr %s18, 128
          %s216 = scalar_lea.hbm %s2, %s215
          %s218 = sshll.u32 %s211, 4
          %s219 = int_to_ptr.vmem [resolvable:$true] %s218
          %221 = dma.hbm_to_vmem [thread:$0]  %s216, 128, %s219, %s208
        $region36: #{tpu_custom_call.1} parent=27 // pred_fallthru
          _
      $region28: #{tpu_custom_call.1} parent=5 // pred_fallthru
        _
      %p222 = scmp.le.s32.totalorder 1, %s18
      %p223 = scmp.lt.s32.totalorder %s18, 3
      %p224 = pnand %p222, %p223
      %p225 = pneg %p224
      // Predicated region
      $region37: #{tpu_custom_call.1} parent=5 // pred_check
        _
      $region38: #{tpu_custom_call.1} parent=5 // pred_check_branch
        %227 = sbr.rel (%p224) target = $region40
      $region39: #{tpu_custom_call.1} parent=5 // pred_region
        %s228 = ssub.s32 %s18, 1
        %s229 = sand.u32 %s78, 1
        %s230 = scalar_lea.sflag [#allocation3], %s229
        %s231 = sand.u32 %s78, 1
        %s232 = smul.addr %s231, 8
        %s233 = scalar_lea.vmem [#allocation2], %s232
        // Predicated region
        $region41: #{tpu_custom_call.1} parent=39 // pred_check
          %p234 = pneg %p91
        $region42: #{tpu_custom_call.1} parent=39 // pred_check_branch
          %236 = sbr.rel (%p234) target = $region44
        $region43: #{tpu_custom_call.1} parent=39 // pred_region
          %237 = dma.done %s230, 128
        $region44: #{tpu_custom_call.1} parent=39 // pred_fallthru
          _
        // Predicated region
        $region45: #{tpu_custom_call.1} parent=39 // pred_check
          %p238 = pneg %p112
        $region46: #{tpu_custom_call.1} parent=39 // pred_check_branch
          %240 = sbr.rel (%p238) target = $region48
        $region47: #{tpu_custom_call.1} parent=39 // pred_region
          %241 = dma.done [#allocation6], 512
        $region48: #{tpu_custom_call.1} parent=39 // pred_fallthru
          _
        %p242 = scmp.lt.s32.totalorder %s23, 1
        %s243 = scalar_select %p242, %s23, 1
        %s244 = smul.addr %s243, 4
        %s245 = scalar_lea.vmem %s0, %s244
        %p246 = pneg %p44
        %p247 = pneg %p41
        %p248 = pneg %p65
        %p249 = pneg %p62
        %s250 = sand.u32 %s78, 1
        %s251 = scalar_lea.sflag [#allocation3], %s250
        %s252 = sand.u32 %s78, 1
        %s253 = smul.addr %s252, 8
        %s254 = scalar_lea.vmem [#allocation2], %s253
        %p255 = pneg %p91
        %p256 = pneg %p88
        %p257 = pneg %p112
        %p258 = pneg %p109
        %p259 = pneg %p133
        %p260 = pneg %p130
        %p261 = pneg %p159
        %p262 = pneg %p156
        %s263 = sand.u32 %s146, 1
        %s264 = scalar_lea.sflag [#allocation4], %s263
        %s265 = sand.u32 %s146, 1
        %s266 = smul.addr %s265, 8
        %s267 = scalar_lea.vmem [#allocation7], %s266
        %p268 = scmp.lt.s32.totalorder %s23, 1
        %s269 = scalar_select %p268, %s23, 1
        %s270 = smul.addr %s269, 4
        %s271 = scalar_lea.vmem %s0, %s270
        %v273 = vld [vmem:[%s233] sm:$0xff]
        %v274 = vld [vmem:[%s271] sm:$0xf]
        %v275 = vld [vmem:[%s1] sm:$0xf]
        %v276 = vld [vmem:[#allocation5] sm:$0xff]
        %v277 = vld [vmem:[#allocation5 + $0x8] sm:$0xff]
        %v278 = vld [vmem:[#allocation5 + $0x10] sm:$0xff]
        %v279 = vld [vmem:[#allocation5 + $0x18] sm:$0xff]
        %vm280 = vcmask 261120
        %v282 = vsel %vm280, %v273, 0
        %284 = vmatprep.subr.mxu0 0.0
        %285 = vmatpush1.msra.mxu0 0.0
        %286 = vmatprep.subr.mxu0 0.0
        %287 = vmatpush1.msra.mxu0 0.0
        %288 = vmatprep.subr.mxu0 0.0
        %289 = vmatpush1.msra.mxu0 0.0
        %290 = vmatprep.subr.mxu0 0.0
        %291 = vmatpush1.msra.mxu0 0.0
        %292 = vmatprep.subr.mxu0 0.0
        %293 = vmatpush1.msra.mxu0 0.0
        %294 = vmatprep.subr.mxu0 0.0
        %295 = vmatpush1.msra.mxu0 0.0
        %296 = vmatprep.subr.mxu0 0.0
        %297 = vmatpush1.msra.mxu0 0.0
        %298 = vmatprep.subr.mxu0 0.0
        %299 = vmatpush1.msra.mxu0 0.0
        %300 = vmatprep.subr.mxu0 0.0
        %301 = vmatpush1.msra.mxu0 0.0
        %302 = vmatprep.subr.mxu0 0.0
        %303 = vmatpush1.msra.mxu0 0.0
        %304 = vmatprep.subr.mxu0 0.0
        %305 = vmatpush1.msra.mxu0 0.0
        %306 = vmatprep.subr.mxu0 0.0
        %307 = vmatpush1.msra.mxu0 0.0
        %308 = vmatprep.subr.mxu0 0.0
        %309 = vmatpush1.msra.mxu0 %v279
        %310 = vmatprep.subr.mxu0 0.0
        %311 = vmatpush1.msra.mxu0 %v278
        %312 = vmatprep.subr.mxu0 0.0
        %313 = vmatpush1.msra.mxu0 %v277
        %314 = vmatprep.subr.mxu0 0.0
        %315 = vmatpush1.msra.mxu0 %v276
        %316 = vmatprep.subr.mxu0 0.0
        %317 = vmatpush2.msra.mxu0 0.0
        %318 = vmatprep.subr.mxu0 0.0
        %319 = vmatpush2.msra.mxu0 0.0
        %320 = vmatprep.subr.mxu0 0.0
        %321 = vmatpush2.msra.mxu0 0.0
        %322 = vmatprep.subr.mxu0 0.0
        %323 = vmatpush2.msra.mxu0 0.0
        %324 = vmatprep.subr.mxu0 0.0
        %325 = vmatpush2.msra.mxu0 0.0
        %326 = vmatprep.subr.mxu0 0.0
        %327 = vmatpush2.msra.mxu0 0.0
        %328 = vmatprep.subr.mxu0 0.0
        %329 = vmatpush2.msra.mxu0 0.0
        %330 = vmatprep.subr.mxu0 0.0
        %331 = vmatpush2.msra.mxu0 0.0
        %332 = vmatprep.subr.mxu0 0.0
        %333 = vmatpush2.msra.mxu0 0.0
        %334 = vmatprep.subr.mxu0 0.0
        %335 = vmatpush2.msra.mxu0 0.0
        %336 = vmatprep.subr.mxu0 0.0
        %337 = vmatpush2.msra.mxu0 0.0
        %338 = vmatprep.subr.mxu0 0.0
        %339 = vmatpush2.msra.mxu0 0.0
        %340 = vmatprep.subr.mxu0 0.0
        %341 = vmatpush2.msra.mxu0 0.0
        %342 = vmatprep.subr.mxu0 0.0
        %343 = vmatpush2.msra.mxu0 0.0
        %344 = vmatprep.subr.mxu0 0.0
        %345 = vmatpush2.msra.mxu0 0.0
        %346 = vmatprep.subr.mxu0 0.0
        %347 = vmatpush2.msra.mxu0 0.0
        %348 = vmatprep.mubr.f32.mxu0 0.0
        %349 = vmatmul.mubr.f32.gmra.mxu0 %v282
        %v350 = vpop.f32.mrf.mxu0
        %v351 = vadd.f32 0.0, %v350
        %v352 = vpop.f32.mrf.mxu0
        %353 = vdwg.mxu0
        %vm354 = vcmask 64512
        %v356 = vsel %vm354, %v274, 0
        %vm358 = vcmask 1043456
        %v360 = vsel %vm358, %v275, 0
        %362 = vmatprep.subr.bf16.mxu0 0
        %363 = vmatpush1.bf16.msra.mxu0 0
        %364 = vmatprep.subr.bf16.mxu0 0
        %365 = vmatpush1.bf16.msra.mxu0 0
        %366 = vmatprep.subr.bf16.mxu0 0
        %367 = vmatpush1.bf16.msra.mxu0 0
        %368 = vmatprep.subr.bf16.mxu0 0
        %369 = vmatpush1.bf16.msra.mxu0 0
        %370 = vmatprep.subr.bf16.mxu0 0
        %371 = vmatpush1.bf16.msra.mxu0 0
        %372 = vmatprep.subr.bf16.mxu0 0
        %373 = vmatpush1.bf16.msra.mxu0 0
        %374 = vmatprep.subr.bf16.mxu0 0
        %375 = vmatpush1.bf16.msra.mxu0 0
        %376 = vmatprep.subr.bf16.mxu0 0
        %377 = vmatpush1.bf16.msra.mxu0 %v360
        %378 = vmatprep.subr.bf16.mxu0 0
        %379 = vmatpush2.bf16.msra.mxu0 0
        %380 = vmatprep.subr.bf16.mxu0 0
        %381 = vmatpush2.bf16.msra.mxu0 0
        %382 = vmatprep.subr.bf16.mxu0 0
        %383 = vmatpush2.bf16.msra.mxu0 0
        %384 = vmatprep.subr.bf16.mxu0 0
        %385 = vmatpush2.bf16.msra.mxu0 0
        %386 = vmatprep.subr.bf16.mxu0 0
        %387 = vmatpush2.bf16.msra.mxu0 0
        %388 = vmatprep.subr.bf16.mxu0 0
        %389 = vmatpush2.bf16.msra.mxu0 0
        %390 = vmatprep.subr.bf16.mxu0 0
        %391 = vmatpush2.bf16.msra.mxu0 0
        %392 = vmatprep.subr.bf16.mxu0 0
        %393 = vmatpush2.bf16.msra.mxu0 0
        %394 = vmatprep.mubr.bf16.mxu0 0
        %395 = vmatmul.mubr.bf16.gmra.mxu0 %v356
        %v396 = vpop.f32.mrf.mxu0
        %v397 = vadd.f32 %v351, %v396
        %v398 = vpop.f32.mrf.mxu0
        %v399 = vpop.f32.mrf.mxu0
        %v400 = vpop.f32.mrf.mxu0
        %401 = vdwg.mxu0
        %v402 = vld [vmem:[%s4] sm:$0x1]
        %v404 = vlaneseq
        %v405 = vshrl.u32 %v404, 7
        %v406 = vsub.s32 0, %v405
        %v407 = vrot.slane %v402, %v406
        %v409 = vadd.f32 %v397, %v407
        %v410 = vxor.u32 %v409, 2147483648
        %v411 = vmul.f32 %v410, 1.442695
        %v412 = vpow.pop %v411
        %v413 = vadd.f32 %v412, 1.0
        %v414 = vrcp.pop %v413
        %v415 = vmul.f32 1.0, %v414
        %417 = vrot.lane.b32.xlu0 %v409, 32
        %v418 = vpop.permute.xlu0 %417
        %v420 = vmul.f32 %v415, %v418
        %422 = vrot.lane.b32.xlu0 %v420, 64
        %v423 = vpop.permute.xlu0 %422
        %v425 = vadd.f32 %v409, %v423
        %v426 = vtanh.pop %v425
        %v427 = vsub.f32 1.0, %v415
        %429 = vrot.lane.b32.xlu0 %v426, 96
        %v430 = vpop.permute.xlu0 %429
        %v432 = vmul.f32 %v427, %v430
        %433 = vrot.lane.b32.xlu0 %v273, 32
        %v434 = vpop.permute.xlu0 %433
        %v436 = vmul.f32 %v415, %v434
        %v437 = vadd.f32 %v432, %v436
        %439 = vrot.lane.b32.xlu0 %v437, 96
        %v440 = vpop.permute.xlu0 %439
        %442 = vst.msk [vmem:[%s267] sm:$0xff] %vm280, %v440
        %s443 = sand.u32 %s146, 1
        %s444 = scalar_lea.sflag [#allocation4], %s443
        %s445 = sand.u32 %s146, 1
        %s446 = smul.addr %s445, 8
        %s447 = scalar_lea.vmem [#allocation7], %s446
        // Predicated region
        $region49: #{tpu_custom_call.1} parent=39 // pred_check
          %p448 = pneg %p156
        $region50: #{tpu_custom_call.1} parent=39 // pred_check_branch
          %450 = sbr.rel (%p448) target = $region52
        $region51: #{tpu_custom_call.1} parent=39 // pred_region
          %s452 = ssub.s32 128, 128
          %453 = vsyncadd %s444, %s452
          %s454 = smul.addr %s23, 128
          %s455 = scalar_lea.hbm %s5, %s454
          %s457 = sshll.u32 %s447, 4
          %s458 = int_to_ptr.vmem [resolvable:$true] %s457
          %460 = dma.vmem_to_hbm [thread:$0]  %s458, 128, %s455, %s444
        $region52: #{tpu_custom_call.1} parent=39 // pred_fallthru
          _
      $region40: #{tpu_custom_call.1} parent=5 // pred_fallthru
        _
      %p461 = scmp.le.s32.totalorder 2, %s18
      // Predicated region
      $region53: #{tpu_custom_call.1} parent=5 // pred_check
        %p462 = pneg %p461
      $region54: #{tpu_custom_call.1} parent=5 // pred_check_branch
        %464 = sbr.rel (%p462) target = $region56
      $region55: #{tpu_custom_call.1} parent=5 // pred_region
        %s465 = ssub.s32 %s18, 2
        // Predicated region
        $region57: #{tpu_custom_call.1} parent=55 // pred_check
          %p466 = pneg %p162
        $region58: #{tpu_custom_call.1} parent=55 // pred_check_branch
          %468 = sbr.rel (%p466) target = $region60
        $region59: #{tpu_custom_call.1} parent=55 // pred_region
          %s469 = sand.u32 %s147, 1
          %s470 = scalar_lea.sflag [#allocation4], %s469
          %s471 = sand.u32 %s147, 1
          %s472 = smul.addr %s471, 8
          %s473 = scalar_lea.vmem [#allocation7], %s472
          %474 = dma.done %s470, 128
        $region60: #{tpu_custom_call.1} parent=55 // pred_fallthru
          _
      $region56: #{tpu_custom_call.1} parent=5 // pred_fallthru
        _
    $region6: #{tpu_custom_call.1} parent=1 // loop_footer
      %s22 = sadd.s32 1, %s18
    $region7: #{tpu_custom_call.1} parent=1 // loop_footer_branch
      %17 = sbr.rel target = $region3
    $region8: #{tpu_custom_call.1} parent=1 // loop_exit
      _
    %475 = vsyncpa [#allocation3], 1
    %s476 = scalar_lea.sflag [#allocation3], 1
    %477 = vsyncpa %s476, 1
    %478 = vsyncpa [#allocation6], 1
    %479 = vsyncpa [#allocation4], 1
    %s480 = scalar_lea.sflag [#allocation4], 1
    %481 = vsyncpa %s480, 1

</llo_original>
